<compile_context>
chip_gen: v7x
topology: tpu7x:2x2x1
jax: 0.10.0
libtpu: 0.0.40
codegen_flags: <defaults>
</compile_context>

<pallas_src>
import functools
import math

import jax
import jax.numpy as jnp
from jax.experimental import pallas as pl
from jax.experimental.pallas import tpu as pltpu

SEQUENCE_LENGTH = 16  # max_len of the positional-encoding buffer


def make_positional_encoding(max_len: int, d_model: int) -> jnp.ndarray:
    """Deterministic pe buffer, shape [max_len, d_model] (PyTorch buffer sans batch dim)."""
    position = jnp.arange(max_len, dtype=jnp.float32)[:, None]              # [L, 1]
    div_term = jnp.exp(
        jnp.arange(0, d_model, 2, dtype=jnp.float32) * (-math.log(10000.0) / d_model)
    )                                                                        # [D/2]
    pe = jnp.zeros((max_len, d_model), dtype=jnp.float32)
    pe = pe.at[:, 0::2].set(jnp.sin(position * div_term))
    pe = pe.at[:, 1::2].set(jnp.cos(position * div_term))
    return pe


def _pe_kernel(seed_ref, x_ref, pe_ref, *rest, p: float, train: bool,
               seq_tile: int, pe_resident: bool, use_onchip_rng: bool):
    apply_dropout = train and p > 0.0
    if apply_dropout and not use_onchip_rng:
        bits_ref, o_ref = rest            # host-generated random bits streamed in
    else:
        (o_ref,) = rest

    x = x_ref[...]                        # (ts, B, D): B = sublane, D = lane

    if pe_resident:
        # pe is the full (padded) buffer in VMEM; pick this step's rows.
        row0 = pl.program_id(0) * seq_tile
        if seq_tile % 8 == 0:
            row0 = pl.multiple_of(row0, 8)
        pe = pe_ref[pl.ds(row0, seq_tile)]    # (ts, 1, D)
    else:
        pe = pe_ref[...]                      # (ts, 1, D), streamed per step

    # Broadcast over the batch (sublane) axis -- no materialized tile.
    y = x + pe

    if apply_dropout:
        # Integer-threshold Bernoulli: keep iff bits >= p * 2^32  (P(keep) = 1 - p).
        threshold = jnp.uint32(min(int(p * (2 ** 32)), 2 ** 32 - 1))
        if use_onchip_rng:
            pltpu.prng_seed(seed_ref[0] + pl.program_id(0))
            bits = pltpu.prng_random_bits(y.shape)
            if bits.dtype != jnp.uint32:      # no-op bitcast skipped when already u32
                bits = pltpu.bitcast(bits, jnp.uint32)
        else:
            bits = bits_ref[...]
        keep = bits >= threshold
        y = jnp.where(keep, y * (1.0 / (1.0 - p)), jnp.zeros_like(y))

    o_ref[...] = y.astype(o_ref.dtype)


def _choose_tiling(seq_len: int, batch: int, d_model: int, dtype):
    """Pick (seq_tile, vmem_limit_bytes) based on the TPU generation's VMEM."""
    itemsize = jnp.dtype(dtype).itemsize
    row_bytes = batch * d_model * itemsize
    try:
        vmem_cap = pltpu.get_tpu_info().vmem_capacity_bytes
    except Exception:
        vmem_cap = 128 * 1024 * 1024
    if vmem_cap <= 64 * 1024 * 1024:
        # v7x-class: only 64 MiB VMEM per TensorCore -> smaller tiles, tighter cap.
        per_stream_budget = 4 * 1024 * 1024
        vmem_limit = 44 * 1024 * 1024
    else:
        # v5e / v6e: 128 MiB VMEM -> ~8 MiB per double-buffered stream.
        per_stream_budget = 8 * 1024 * 1024
        vmem_limit = 64 * 1024 * 1024

    ts = max(1, per_stream_budget // max(1, row_bytes))
    # Guarantee >= 2 grid steps whenever the sequence allows so that
    # dimension_semantics=("parallel",) actually shards across v7x's two cores.
    if seq_len >= 2:
        ts = min(ts, -(-seq_len // 2))
    ts = min(ts, seq_len)
    # Tidy 8-row alignment for the in-kernel pe slice / DMA (not required for
    # the outer dim of a 3-D block, so small sequences keep their raw tile).
    if ts >= 8:
        ts = (ts // 8) * 8
    return ts, vmem_limit


def positional_encoding_forward(x, pe, *, p: float = 0.1, train: bool = False,
                                seed: int = 0, use_onchip_rng=None):
    """x: [seq_len, batch, d_model]; pe: [max_len, d_model]."""
    S, B, D = x.shape
    max_len, d_model = pe.shape
    assert d_model == D and S <= max_len

    if use_onchip_rng is None:
        # pltpu.prng_seed only lowers on real TPUs; fall back to host bits otherwise.
        use_onchip_rng = jax.default_backend() == "tpu"

    apply_dropout = train and p > 0.0
    portable_bits = apply_dropout and not use_onchip_rng

    ts, vmem_limit = _choose_tiling(S, B, D, x.dtype)
    grid_len = pl.cdiv(S, ts)
    grid = (grid_len,)

    itemsize = jnp.dtype(x.dtype).itemsize
    pe3 = pe.astype(x.dtype)[:, None, :]            # (max_len, 1, D), x.dtype

    # Make pe resident in VMEM (constant block index -> single HBM fetch) when
    # the padded buffer is small; otherwise stream it per tile.
    pe_pad_rows = grid_len * ts
    pe_resident = pe_pad_rows * D * itemsize <= 4 * 1024 * 1024
    if pe_resident:
        if pe_pad_rows > max_len:
            pe3 = jnp.pad(pe3, ((0, pe_pad_rows - max_len), (0, 0), (0, 0)))
        else:
            pe3 = pe3[:pe_pad_rows]
        pe_spec = pl.BlockSpec((pe_pad_rows, 1, D), lambda i, s: (0, 0, 0))
        pe_bytes = pe_pad_rows * D * itemsize
    else:
        pe_spec = pl.BlockSpec((ts, 1, D), lambda i, s: (i, 0, 0))
        pe_bytes = S * D * itemsize

    seed_arr = jnp.array([seed], dtype=jnp.int32)
    inputs = [seed_arr, x, pe3]
    in_specs = [
        pl.BlockSpec((ts, B, D), lambda i, s: (i, 0, 0)),
        pe_spec,
    ]
    bytes_accessed = 2 * S * B * D * itemsize + pe_bytes

    if portable_bits:
        bits = jax.random.bits(jax.random.PRNGKey(seed), (S, B, D), dtype=jnp.uint32)
        inputs.append(bits)
        in_specs.append(pl.BlockSpec((ts, B, D), lambda i, s: (i, 0, 0)))
        bytes_accessed += S * B * D * 4

    kernel = functools.partial(
        _pe_kernel, p=float(p), train=bool(train), seq_tile=ts,
        pe_resident=bool(pe_resident), use_onchip_rng=bool(use_onchip_rng))

    out = pl.pallas_call(
        kernel,
        out_shape=jax.ShapeDtypeStruct((S, B, D), x.dtype),
        grid_spec=pltpu.PrefetchScalarGridSpec(
            num_scalar_prefetch=1,        # seed lands in SMEM
            grid=grid,
            in_specs=in_specs,
            out_specs=pl.BlockSpec((ts, B, D), lambda i, s: (i, 0, 0)),
        ),
        compiler_params=pltpu.CompilerParams(
            dimension_semantics=("parallel",),     # megacore sharding on v7x
            vmem_limit_bytes=vmem_limit,
        ),
        cost_estimate=pl.CostEstimate(
            flops=(2 if apply_dropout else 1) * S * B * D,
            transcendentals=0,
            bytes_accessed=bytes_accessed,
        ),
    )(*inputs)

    return out


if __name__ == "__main__":
    seq_len, batch, d_model = 8, 2, 32
    dropout_p = 0.1

    key = jax.random.PRNGKey(0)
    x = jax.random.normal(key, (seq_len, batch, d_model), dtype=jnp.float32)
    pe = make_positional_encoding(SEQUENCE_LENGTH, d_model)
    y_ref = x + pe[:seq_len][:, None, :]

    # Eval-mode forward (dropout is identity) -- exact check against reference.
    y_eval = positional_encoding_forward(x, pe, p=dropout_p, train=False)
    y_eval = jax.block_until_ready(y_eval)
    assert jnp.allclose(y_eval, y_ref, atol=1e-6), "eval-mode mismatch"

    # Training-mode forward: every element must be either 0 (dropped) or
    # reference * 1/(1-p) (kept) -- holds for any RNG stream.
    y_train = positional_encoding_forward(x, pe, p=dropout_p, train=True, seed=123)
    y_train = jax.block_until_ready(y_train)
    assert y_train.shape == (seq_len, batch, d_model)
    scale = 1.0 / (1.0 - dropout_p)
    ok = jnp.isclose(y_train, 0.0, atol=1e-6) | jnp.isclose(
        y_train, y_ref * scale, atol=1e-5)
    assert bool(jnp.all(ok)), "train-mode dropout semantics mismatch"

    print("KERNEL_OK")
</pallas_src>

<mosaic_0001>
module attributes {stable_mosaic.version = 11 : i64} {
  func.func @_pe_kernel(%arg0: i32, %arg1: memref<1xi32, #tpu.memory_space<smem>>, %arg2: memref<4x2x32xf32, #tpu.memory_space<vmem>>, %arg3: memref<8x1x32xf32, #tpu.memory_space<vmem>>, %arg4: memref<4x2x32xf32, #tpu.memory_space<vmem>>) attributes {dimension_semantics = [#tpu.dimension_semantics<parallel>], iteration_bounds = array<i64: 2>, scalar_prefetch = 1 : i64, scratch_operands = 0 : i64, tpu.core_type = #tpu.core_type<tc>, window_params = [{transform_indices = @transform_0, window_bounds = array<i64: 4, 2, 32>}, {pipeline_mode = #tpu.pipeline_mode<synchronous>, transform_indices = @transform_1, window_bounds = array<i64: 8, 1, 32>}, {transform_indices = @transform_2, window_bounds = array<i64: 4, 2, 32>}]} {
    %c0 = arith.constant 0 : index
    %c0_0 = arith.constant 0 : index
    %c0_1 = arith.constant 0 : index
    %0 = vector.load %arg2[%c0, %c0_0, %c0_1] : memref<4x2x32xf32, #tpu.memory_space<vmem>>, vector<4x2x32xf32>
    %c4_i32 = arith.constant 4 : i32
    %1 = arith.muli %arg0, %c4_i32 : i32
    %2 = arith.index_cast %1 : i32 to index
    %c0_2 = arith.constant 0 : index
    %c0_3 = arith.constant 0 : index
    %3 = vector.load %arg3[%2, %c0_2, %c0_3] : memref<8x1x32xf32, #tpu.memory_space<vmem>>, vector<4x1x32xf32>
    %4 = vector.broadcast %3 : vector<4x1x32xf32> to vector<4x2x32xf32>
    %5 = arith.addf %0, %4 : vector<4x2x32xf32>
    %c0_4 = arith.constant 0 : index
    %c0_5 = arith.constant 0 : index
    %c0_6 = arith.constant 0 : index
    %6 = vector.load %arg4[%c0_4, %c0_5, %c0_6] : memref<4x2x32xf32, #tpu.memory_space<vmem>>, vector<4x2x32xf32>
    tpu.vector_store %arg4[%c0_4, %c0_5, %c0_6], %5 {strides = array<i32>} : memref<4x2x32xf32, #tpu.memory_space<vmem>>, vector<4x2x32xf32>,
    return
  }
  func.func @transform_0(%arg0: i32, %arg1: memref<1xi32, #tpu.memory_space<smem>>) -> (i32, i32, i32) {
    %c0_i32 = arith.constant 0 : i32
    %c0_i32_0 = arith.constant 0 : i32
    %c0_i32_1 = arith.constant 0 : i32
    return %arg0, %c0_i32, %c0_i32_0 : i32, i32, i32
  }
  func.func @transform_1(%arg0: i32, %arg1: memref<1xi32, #tpu.memory_space<smem>>) -> (i32, i32, i32) {
    %c0_i32 = arith.constant 0 : i32
    %c0_i32_0 = arith.constant 0 : i32
    %c0_i32_1 = arith.constant 0 : i32
    %c0_i32_2 = arith.constant 0 : i32
    return %c0_i32, %c0_i32_0, %c0_i32_1 : i32, i32, i32
  }
  func.func @transform_2(%arg0: i32, %arg1: memref<1xi32, #tpu.memory_space<smem>>) -> (i32, i32, i32) {
    %c0_i32 = arith.constant 0 : i32
    %c0_i32_0 = arith.constant 0 : i32
    %c0_i32_1 = arith.constant 0 : i32
    return %arg0, %c0_i32, %c0_i32_0 : i32, i32, i32
  }
}

</mosaic_0001>

<llo_original>
// kernel: tpu_custom_call.1
$region0: #{tpu_custom_call.1}
  #allocation0 [shape = 'u32[]', space=smem, size = 0x4, offset = 0x4, fixed_abs, tag = 'smem constant byte address 0x4 - core index']
  #allocation1 [shape = 'u32[144,128]{1,0:T(1,128)}', space=vmem, size = 0x12000, scoped, tag = 'internal scratch']
  #allocation2 [shape = 's32[1]{0}', space=sflag, size = 0x4, scoped, tag = 'scoped memory for tpu_custom_call.1']
  #allocation3 [shape = 's32[1]{0:T(128)S(6)}', space=smem, size = 0x200, scoped, tag = 'prefetched SMEM operand 0']
  %s0 = inlined_call_operand.<no memory space> [shape: s32[1], index: 0, kind: input, shape index: {}]
  %s1 = inlined_call_operand.hbm [shape: f32[8,2,32], index: 1, kind: input, shape index: {}]
  %s2 = inlined_call_operand.hbm [shape: f32[8,1,32], index: 2, kind: input, shape index: {}]
  %s3 = inlined_call_operand.hbm [shape: f32[8,2,32], index: 3, kind: output, shape index: {}]
  %s4 = sld [smem:[#allocation0]]
  $region49: #{tpu_custom_call.1} parent=0
    _
  %s6 = ssub.s32 1, %s4
  %s7 = scalar_select 0, %s6, %s4
  %8 = sst [smem:[#allocation3]] %s0
  $region1: #{tpu_custom_call.1} parent=0
    #allocation4 [shape = 'u8[8192]{0}', space=vmem, size = 0x2000, scoped, tag = 'input window, operand 1']
    #allocation5 [shape = 's32[2]{0}', space=sflag, size = 0x8, scoped, tag = 'scoped memory for tpu_custom_call.1']
    #allocation6 [shape = 's32[2]{0}', space=sflag, size = 0x8, scoped, tag = 'scoped memory for tpu_custom_call.1']
    #allocation7 [shape = 'u8[4096]{0}', space=vmem, size = 0x1000, scoped, tag = 'input window, operand 2, single buffered']
    #allocation8 [shape = 's32[1]{0}', space=sflag, size = 0x4, scoped, tag = 'scoped memory for tpu_custom_call.1']
    #allocation9 [shape = 'u8[8192]{0}', space=vmem, size = 0x2000, scoped, tag = 'output window, operand 0']
    %9 = vsyncpa [#allocation5], 0
    %s10 = scalar_lea.sflag [#allocation5], 1
    %11 = vsyncpa %s10, 0
    %12 = vsyncpa [#allocation8], 0
    %13 = vsyncpa [#allocation6], 0
    %s14 = scalar_lea.sflag [#allocation6], 1
    %15 = vsyncpa %s14, 0
    loop: start=0, step=1, limit=4
    $region2: #{tpu_custom_call.1} parent=1 // loop_pre_header
      _
    $region3: #{tpu_custom_call.1} parent=1 // loop_header
      %s17 = sphi 0, %s21
      %p18 = scmp.ge.s32.totalorder %s17, 4
      %s27 = sphi 0, %s29
      %s30 = sphi 0, %s27
      %s31 = sphi 0, %s30
      %s47 = sphi 0, %s31
      %s51 = sphi 0, %s51
      %s53 = sphi 0, %s51
      %s54 = sphi 0, %s53
      %s68 = sphi 0, %s54
      %s74 = sphi 0, %s76
      %s77 = sphi 0, %s74
      %s78 = sphi 0, %s77
      %s94 = sphi 0, %s78
    $region4: #{tpu_custom_call.1} parent=1 // loop_header_branch
      %20 = sbr.rel (%p18) target = $region8
    $region5: #{tpu_custom_call.1} parent=1 // loop_body
      %s22 = ssub.s32 %s17, 1
      %s23 = ssub.s32 %s17, 2
      %s24 = sadd.s32 %s17, 1
      %s25 = ssub.s32 %s17, %s24
      %p26 = scmp.eq.s32.totalorder %s25, 0
      %s28 = sadd.s32 %s27, 1
      %s29 = scalar_select %p26, %s27, %s28
      %p32 = pneg %p26
      %p33 = scmp.eq.s32.totalorder %s17, 1
      %p34 = por %p32, %p33
      %p35 = scmp.ne.s32.totalorder %s27, %s30
      %p36 = scmp.eq.s32.totalorder %s17, 0
      %p37 = por %p35, %p36
      %p38 = scmp.ne.s32.totalorder %s27, %s30
      %p39 = scmp.eq.s32.totalorder %s22, 1
      %p40 = por %p38, %p39
      %p41 = scmp.ne.s32.totalorder %s30, %s31
      %p42 = scmp.eq.s32.totalorder %s22, 0
      %p43 = por %p41, %p42
      %p44 = scmp.ne.s32.totalorder %s30, %s31
      %p45 = scmp.eq.s32.totalorder %s23, 1
      %p46 = por %p44, %p45
      %p48 = scmp.ne.s32.totalorder %s31, %s47
      %p49 = scmp.eq.s32.totalorder %s23, 0
      %p50 = por %p48, %p49
      %s52 = sadd.s32 %s51, 1
      %p55 = scmp.eq.s32.totalorder %s17, 1
      %p56 = scmp.ne.s32.totalorder %s51, %s53
      %p57 = scmp.eq.s32.totalorder %s17, 0
      %p58 = por %p56, %p57
      %p59 = scmp.ne.s32.totalorder %s51, %s53
      %p60 = scmp.eq.s32.totalorder %s22, 1
      %p61 = por %p59, %p60
      %p62 = scmp.ne.s32.totalorder %s53, %s54
      %p63 = scmp.eq.s32.totalorder %s22, 0
      %p64 = por %p62, %p63
      %p65 = scmp.ne.s32.totalorder %s53, %s54
      %p66 = scmp.eq.s32.totalorder %s23, 1
      %p67 = por %p65, %p66
      %p69 = scmp.ne.s32.totalorder %s54, %s68
      %p70 = scmp.eq.s32.totalorder %s23, 0
      %p71 = por %p69, %p70
      %s72 = ssub.s32 %s17, %s24
      %p73 = scmp.eq.s32.totalorder %s72, 0
      %s75 = sadd.s32 %s74, 1
      %s76 = scalar_select %p73, %s74, %s75
      %p79 = pneg %p73
      %p80 = scmp.eq.s32.totalorder %s17, 1
      %p81 = por %p79, %p80
      %p82 = scmp.ne.s32.totalorder %s74, %s77
      %p83 = scmp.eq.s32.totalorder %s17, 0
      %p84 = por %p82, %p83
      %p85 = scmp.ne.s32.totalorder %s74, %s77
      %p86 = scmp.eq.s32.totalorder %s22, 1
      %p87 = por %p85, %p86
      %p88 = scmp.ne.s32.totalorder %s77, %s78
      %p89 = scmp.eq.s32.totalorder %s22, 0
      %p90 = por %p88, %p89
      %p91 = scmp.ne.s32.totalorder %s77, %s78
      %p92 = scmp.eq.s32.totalorder %s23, 1
      %p93 = por %p91, %p92
      %p95 = scmp.ne.s32.totalorder %s78, %s94
      %p96 = scmp.eq.s32.totalorder %s23, 0
      %p97 = por %p95, %p96
      %p98 = scmp.le.s32.totalorder 1, %s17
      %p99 = scmp.lt.s32.totalorder %s17, 3
      %p100 = pnand %p98, %p99
      %p101 = pneg %p100
      // Predicated region
      $region9: #{tpu_custom_call.1} parent=5 // pred_check
        _
      $region10: #{tpu_custom_call.1} parent=5 // pred_check_branch
        %103 = sbr.rel (%p100) target = $region12
      $region11: #{tpu_custom_call.1} parent=5 // pred_region
        %s104 = ssub.s32 %s17, 1
        // Predicated region
        $region13: #{tpu_custom_call.1} parent=11 // pred_check
          %p105 = pneg %p64
        $region14: #{tpu_custom_call.1} parent=11 // pred_check_branch
          %107 = sbr.rel (%p105) target = $region16
        $region15: #{tpu_custom_call.1} parent=11 // pred_region
          %s109 = ssub.s32 128, 128
          %110 = vsyncadd [#allocation8], %s109
          %s111 = sshll.u32 [#allocation7], 4
          %s112 = int_to_ptr.vmem [resolvable:$true] %s111
          %117 = dma.hbm_to_vmem [thread:$0]  %s2, 128, %s112, [#allocation8], 16, 16, 1
        $region16: #{tpu_custom_call.1} parent=11 // pred_fallthru
          _
      $region12: #{tpu_custom_call.1} parent=5 // pred_fallthru
        _
      %p118 = scmp.lt.s32.totalorder %s17, 2
      // Predicated region
      $region17: #{tpu_custom_call.1} parent=5 // pred_check
        %p119 = pneg %p118
      $region18: #{tpu_custom_call.1} parent=5 // pred_check_branch
        %121 = sbr.rel (%p119) target = $region20
      $region19: #{tpu_custom_call.1} parent=5 // pred_region
        // Predicated region
        $region21: #{tpu_custom_call.1} parent=19 // pred_check
          %p122 = pneg %p37
        $region22: #{tpu_custom_call.1} parent=19 // pred_check_branch
          %124 = sbr.rel (%p122) target = $region24
        $region23: #{tpu_custom_call.1} parent=19 // pred_region
          %s125 = sand.u32 %s27, 1
          %s126 = scalar_lea.sflag [#allocation5], %s125
          %s127 = sand.u32 %s27, 1
          %s128 = smul.addr %s127, 8
          %s129 = scalar_lea.vmem [#allocation4], %s128
          %s130 = smul.u32 4, %s17
          %s132 = ssub.s32 128, 128
          %133 = vsyncadd %s126, %s132
          %s134 = smul.addr %s130, 32
          %s135 = scalar_lea.hbm %s1, %s134
          %s136 = sshll.u32 %s129, 4
          %s137 = int_to_ptr.vmem [resolvable:$true] %s136
          %142 = dma.hbm_to_vmem [thread:$0]  %s135, 128, %s137, %s126, 32, 32, 2
        $region24: #{tpu_custom_call.1} parent=19 // pred_fallthru
          _
      $region20: #{tpu_custom_call.1} parent=5 // pred_fallthru
        _
      %p143 = scmp.le.s32.totalorder 1, %s17
      %p144 = scmp.lt.s32.totalorder %s17, 3
      %p145 = pnand %p143, %p144
      %p146 = pneg %p145
      // Predicated region
      $region25: #{tpu_custom_call.1} parent=5 // pred_check
        _
      $region26: #{tpu_custom_call.1} parent=5 // pred_check_branch
        %148 = sbr.rel (%p145) target = $region28
      $region27: #{tpu_custom_call.1} parent=5 // pred_region
        %s149 = ssub.s32 %s17, 1
        %s150 = sand.u32 %s30, 1
        %s151 = scalar_lea.sflag [#allocation5], %s150
        %s152 = sand.u32 %s30, 1
        %s153 = smul.addr %s152, 8
        %s154 = scalar_lea.vmem [#allocation4], %s153
        // Predicated region
        $region29: #{tpu_custom_call.1} parent=27 // pred_check
          %p155 = pneg %p43
        $region30: #{tpu_custom_call.1} parent=27 // pred_check_branch
          %157 = sbr.rel (%p155) target = $region32
        $region31: #{tpu_custom_call.1} parent=27 // pred_region
          %158 = dma.done %s151, 128
        $region32: #{tpu_custom_call.1} parent=27 // pred_fallthru
          _
        // Predicated region
        $region33: #{tpu_custom_call.1} parent=27 // pred_check
          %p159 = pneg %p64
        $region34: #{tpu_custom_call.1} parent=27 // pred_check_branch
          %161 = sbr.rel (%p159) target = $region36
        $region35: #{tpu_custom_call.1} parent=27 // pred_region
          %162 = dma.done [#allocation8], 128
        $region36: #{tpu_custom_call.1} parent=27 // pred_fallthru
          _
        %s163 = sand.u32 %s30, 1
        %s164 = scalar_lea.sflag [#allocation5], %s163
        %s165 = sand.u32 %s30, 1
        %s166 = smul.addr %s165, 8
        %s167 = scalar_lea.vmem [#allocation4], %s166
        %p168 = pneg %p43
        %p169 = pneg %p40
        %p170 = pneg %p64
        %p171 = pneg %p61
        %p172 = pneg %p90
        %p173 = pneg %p87
        %s174 = sand.u32 %s77, 1
        %s175 = scalar_lea.sflag [#allocation6], %s174
        %s176 = sand.u32 %s77, 1
        %s177 = smul.addr %s176, 8
        %s178 = scalar_lea.vmem [#allocation9], %s177
        %s179 = smul.u32 4, %s22
        %s180 = smul.u32 4, %s22
        %v181 = vld [vmem:[%s154] sm:$0x3]
        %v182 = vld [vmem:[%s154 + $0x2] sm:$0x3]
        %v183 = vld [vmem:[%s154 + $0x4] sm:$0x3]
        %v184 = vld [vmem:[%s154 + $0x6] sm:$0x3]
        %s185 = smul.u32 %s22, 4
        %s186 = scalar_lea.vmem [#allocation7], %s185
        %v187 = vld [vmem:[%s186] sm:$0x1]
        %v188 = vld [vmem:[%s186 + $0x1] sm:$0x1]
        %v189 = vld [vmem:[%s186 + $0x2] sm:$0x1]
        %v190 = vld [vmem:[%s186 + $0x3] sm:$0x1]
        %v195 = vlaneseq
        %v196 = vshrl.u32 %v195, 7
        %v197 = vsub.s32 0, %v196
        %v198 = vrot.slane %v187, %v197
        %v199 = vlaneseq
        %v200 = vshrl.u32 %v199, 7
        %v201 = vsub.s32 0, %v200
        %v202 = vrot.slane %v188, %v201
        %v203 = vlaneseq
        %v204 = vshrl.u32 %v203, 7
        %v205 = vsub.s32 0, %v204
        %v206 = vrot.slane %v189, %v205
        %v207 = vlaneseq
        %v208 = vshrl.u32 %v207, 7
        %v209 = vsub.s32 0, %v208
        %v210 = vrot.slane %v190, %v209
        %v215 = vadd.f32 %v181, %v198
        %v216 = vadd.f32 %v182, %v202
        %v217 = vadd.f32 %v183, %v206
        %v218 = vadd.f32 %v184, %v210
        %vm219 = vcmask 254976
        %220 = vst.msk [vmem:[%s178] sm:$0x3] %vm219, %v215
        %221 = vst.msk [vmem:[%s178 + $0x2] sm:$0x3] %vm219, %v216
        %222 = vst.msk [vmem:[%s178 + $0x4] sm:$0x3] %vm219, %v217
        %223 = vst.msk [vmem:[%s178 + $0x6] sm:$0x3] %vm219, %v218
        %s224 = sand.u32 %s77, 1
        %s225 = scalar_lea.sflag [#allocation6], %s224
        %s226 = sand.u32 %s77, 1
        %s227 = smul.addr %s226, 8
        %s228 = scalar_lea.vmem [#allocation9], %s227
        // Predicated region
        $region37: #{tpu_custom_call.1} parent=27 // pred_check
          %p229 = pneg %p87
        $region38: #{tpu_custom_call.1} parent=27 // pred_check_branch
          %231 = sbr.rel (%p229) target = $region40
        $region39: #{tpu_custom_call.1} parent=27 // pred_region
          %s232 = smul.u32 4, %s22
          %s234 = ssub.s32 128, 128
          %235 = vsyncadd %s225, %s234
          %s236 = smul.addr %s232, 32
          %s237 = scalar_lea.hbm %s3, %s236
          %s238 = sshll.u32 %s228, 4
          %s239 = int_to_ptr.vmem [resolvable:$true] %s238
          %244 = dma.vmem_to_hbm [thread:$0]  %s239, 128, %s237, %s225, 32, 32, 2
        $region40: #{tpu_custom_call.1} parent=27 // pred_fallthru
          _
      $region28: #{tpu_custom_call.1} parent=5 // pred_fallthru
        _
      %p245 = scmp.le.s32.totalorder 2, %s17
      // Predicated region
      $region41: #{tpu_custom_call.1} parent=5 // pred_check
        %p246 = pneg %p245
      $region42: #{tpu_custom_call.1} parent=5 // pred_check_branch
        %248 = sbr.rel (%p246) target = $region44
      $region43: #{tpu_custom_call.1} parent=5 // pred_region
        %s249 = ssub.s32 %s17, 2
        // Predicated region
        $region45: #{tpu_custom_call.1} parent=43 // pred_check
          %p250 = pneg %p93
        $region46: #{tpu_custom_call.1} parent=43 // pred_check_branch
          %252 = sbr.rel (%p250) target = $region48
        $region47: #{tpu_custom_call.1} parent=43 // pred_region
          %s253 = sand.u32 %s78, 1
          %s254 = scalar_lea.sflag [#allocation6], %s253
          %s255 = sand.u32 %s78, 1
          %s256 = smul.addr %s255, 8
          %s257 = scalar_lea.vmem [#allocation9], %s256
          %258 = dma.done %s254, 128
        $region48: #{tpu_custom_call.1} parent=43 // pred_fallthru
          _
      $region44: #{tpu_custom_call.1} parent=5 // pred_fallthru
        _
    $region6: #{tpu_custom_call.1} parent=1 // loop_footer
      %s21 = sadd.s32 1, %s17
    $region7: #{tpu_custom_call.1} parent=1 // loop_footer_branch
      %16 = sbr.rel target = $region3
    $region8: #{tpu_custom_call.1} parent=1 // loop_exit
      _
    %259 = vsyncpa [#allocation5], 1
    %s260 = scalar_lea.sflag [#allocation5], 1
    %261 = vsyncpa %s260, 1
    %262 = vsyncpa [#allocation8], 1
    %263 = vsyncpa [#allocation6], 1
    %s264 = scalar_lea.sflag [#allocation6], 1
    %265 = vsyncpa %s264, 1

</llo_original>
